<compile_context>
chip_gen: v7x
topology: tpu7x:2x2x1
jax: 0.10.0
libtpu: 0.0.40
codegen_flags: <defaults>
</compile_context>

<pallas_src>
import functools

import jax
import jax.numpy as jnp
from jax.experimental import pallas as pl
from jax.experimental.pallas import tpu as pltpu


def _compute_loss(b_ref, loss_type):
    """b_ref: (8, TR, 128) packed coordinate planes -> (TR, 128) loss."""
    px = b_ref[0]
    py = b_ref[1]
    pw = b_ref[2]
    ph = b_ref[3]
    tx = b_ref[4]
    ty = b_ref[5]
    tw = b_ref[6]
    th = b_ref[7]

    # corners computed once, reused by the giou branch
    hw_p = pw * 0.5
    hh_p = ph * 0.5
    hw_t = tw * 0.5
    hh_t = th * 0.5
    p_min_x = px - hw_p
    p_max_x = px + hw_p
    p_min_y = py - hh_p
    p_max_y = py + hh_p
    t_min_x = tx - hw_t
    t_max_x = tx + hw_t
    t_min_y = ty - hh_t
    t_max_y = ty + hh_t

    tl_x = jnp.maximum(p_min_x, t_min_x)
    tl_y = jnp.maximum(p_min_y, t_min_y)
    br_x = jnp.minimum(p_max_x, t_max_x)
    br_y = jnp.minimum(p_max_y, t_max_y)

    area_p = pw * ph
    area_g = tw * th

    # en = prod over dims of (tl < br).float()
    en = jnp.where(jnp.logical_and(tl_x < br_x, tl_y < br_y), 1.0, 0.0)
    area_i = (br_x - tl_x) * (br_y - tl_y) * en

    # division via EUP reciprocal (exact mode — do NOT use approx=True here)
    iou = area_i * pl.reciprocal(area_p + area_g - area_i + 1e-16, approx=False)

    if loss_type == "iou":
        loss = 1.0 - iou * iou
    elif loss_type == "giou":
        c_tl_x = jnp.minimum(p_min_x, t_min_x)
        c_tl_y = jnp.minimum(p_min_y, t_min_y)
        c_br_x = jnp.maximum(p_max_x, t_max_x)
        c_br_y = jnp.maximum(p_max_y, t_max_y)
        area_c = (c_br_x - c_tl_x) * (c_br_y - c_tl_y)
        giou = iou - (area_c - area_i) * pl.reciprocal(
            jnp.maximum(area_c, 1e-16), approx=False)
        loss = 1.0 - jnp.clip(giou, -1.0, 1.0)
    else:
        raise ValueError(f"unknown loss_type: {loss_type}")
    return loss


def _iou_loss_kernel(b_ref, o_ref, *, loss_type):
    # per-box loss, dense (TR, 128) output block (unmasked vst)
    o_ref[...] = _compute_loss(b_ref, loss_type).astype(o_ref.dtype)


def _iou_loss_partial_kernel(b_ref, o_ref, *, loss_type, n_valid):
    # per-block partial sums -> (8, 128) lane-dense partial, grid stays parallel
    loss = _compute_loss(b_ref, loss_type)
    tr, lanes = loss.shape
    i = pl.program_id(0)
    row = jax.lax.broadcasted_iota(jnp.int32, (tr, lanes), 0)
    lane = jax.lax.broadcasted_iota(jnp.int32, (tr, lanes), 1)
    gidx = (i * tr + row) * lanes + lane
    # mask off zero-padded boxes and any ragged-block garbage (select, NaN-safe)
    loss = jnp.where(gidx < n_valid, loss, 0.0)
    # sublane-aligned fold to an (8,128) accumulator (cheap VPU adds, good numerics)
    o_ref[0] = loss.reshape(tr // 8, 8, lanes).sum(axis=0)


def _iou_loss_packed(planes, n, *, reduction, loss_type, block_rows):
    """planes: (8, n) SoA box planes [pred cx,cy,w,h, target cx,cy,w,h]."""
    lanes = 128
    sub = 8
    # pad only to a multiple of 1024 boxes (bounds pad waste to <1024 boxes)
    n_pad = ((n + sub * lanes - 1) // (sub * lanes)) * (sub * lanes)
    rows_pad = n_pad // lanes
    if planes.shape[1] != n_pad:
        planes = jnp.pad(planes, ((0, 0), (0, n_pad - planes.shape[1])))
    planes = planes.reshape(8, rows_pad, lanes)

    block_rows = max(sub, (block_rows // sub) * sub)  # multiple of 8
    tr = min(block_rows, rows_pad)
    grid = (pl.cdiv(rows_pad, tr),)
    in_spec = pl.BlockSpec((8, tr, lanes), lambda i: (0, i, 0))

    if reduction in ("mean", "sum"):
        kernel = functools.partial(
            _iou_loss_partial_kernel, loss_type=loss_type, n_valid=n)
        partials = pl.pallas_call(
            kernel,
            out_shape=jax.ShapeDtypeStruct((grid[0], 8, lanes), jnp.float32),
            grid_spec=pltpu.PrefetchScalarGridSpec(
                num_scalar_prefetch=0,
                grid=grid,
                in_specs=[in_spec],
                out_specs=pl.BlockSpec((1, 8, lanes), lambda i: (i, 0, 0)),
            ),
            compiler_params=pltpu.CompilerParams(
                dimension_semantics=("parallel",)),
        )(planes)
        total = jnp.sum(partials)
        if reduction == "mean":
            return total / n
        return total

    kernel = functools.partial(_iou_loss_kernel, loss_type=loss_type)
    loss2d = pl.pallas_call(
        kernel,
        out_shape=jax.ShapeDtypeStruct((rows_pad, lanes), jnp.float32),
        grid_spec=pltpu.PrefetchScalarGridSpec(
            num_scalar_prefetch=0,
            grid=grid,
            in_specs=[in_spec],
            out_specs=pl.BlockSpec((tr, lanes), lambda i: (i, 0)),
        ),
        compiler_params=pltpu.CompilerParams(
            dimension_semantics=("parallel",)),
    )(planes)
    loss = loss2d.reshape(-1)
    if loss.shape[0] != n:
        loss = loss[:n]
    return loss


def iou_loss(pred, target, *, reduction="none", loss_type="iou", block_rows=512):
    """Pallas equivalent of IOUloss.forward.

    pred / target: any shape that flattens to (-1, 4), (cx, cy, w, h) boxes.
    Returns (N,) for reduction='none', scalar for 'mean'/'sum'.
    """
    assert pred.shape[0] == target.shape[0]
    pred = pred.reshape(-1, 4).astype(jnp.float32)
    target = target.reshape(-1, 4).astype(jnp.float32)
    n = pred.shape[0]

    if n == 0:  # guard degenerate / empty grid
        loss = jnp.zeros((0,), jnp.float32)
        if reduction == "mean":
            return loss.mean()
        if reduction == "sum":
            return loss.sum()
        return loss

    # AoS (N,4) -> SoA (8,N) pack; under jit this fuses to a single copy pass.
    planes = jnp.concatenate([pred.T, target.T], axis=0)  # (8, n)
    return _iou_loss_packed(planes, n, reduction=reduction,
                            loss_type=loss_type, block_rows=block_rows)


def _iou_loss_ref(pred, target, *, reduction="none", loss_type="iou"):
    """Plain-JAX reference mirroring the PyTorch module exactly."""
    pred = pred.reshape(-1, 4).astype(jnp.float32)
    target = target.reshape(-1, 4).astype(jnp.float32)
    tl = jnp.maximum(pred[:, :2] - pred[:, 2:] / 2, target[:, :2] - target[:, 2:] / 2)
    br = jnp.minimum(pred[:, :2] + pred[:, 2:] / 2, target[:, :2] + target[:, 2:] / 2)
    area_p = jnp.prod(pred[:, 2:], axis=1)
    area_g = jnp.prod(target[:, 2:], axis=1)
    en = jnp.prod((tl < br).astype(jnp.float32), axis=1)
    area_i = jnp.prod(br - tl, axis=1) * en
    iou = area_i / (area_p + area_g - area_i + 1e-16)
    if loss_type == "iou":
        loss = 1 - iou ** 2
    else:
        c_tl = jnp.minimum(pred[:, :2] - pred[:, 2:] / 2, target[:, :2] - target[:, 2:] / 2)
        c_br = jnp.maximum(pred[:, :2] + pred[:, 2:] / 2, target[:, :2] + target[:, 2:] / 2)
        area_c = jnp.prod(c_br - c_tl, axis=1)
        giou = iou - (area_c - area_i) / jnp.maximum(area_c, 1e-16)
        loss = 1 - jnp.clip(giou, -1.0, 1.0)
    if reduction == "mean":
        loss = loss.mean()
    elif reduction == "sum":
        loss = loss.sum()
    return loss


if __name__ == "__main__":
    key = jax.random.PRNGKey(0)
    k1, k2, k3, k4 = jax.random.split(key, 4)

    ok = True
    # n=256 (lane-aligned) and n=300 (exercises padding / masking paths)
    for n in (256, 300):
        # boxes in (cx, cy, w, h): centers in [0, 16), sizes in (0, 8)
        pred = jnp.concatenate(
            [jax.random.uniform(k1, (n, 2)) * 16.0,
             jax.random.uniform(k2, (n, 2)) * 8.0 + 0.1], axis=1)
        target = jnp.concatenate(
            [jax.random.uniform(k3, (n, 2)) * 16.0,
             jax.random.uniform(k4, (n, 2)) * 8.0 + 0.1], axis=1)

        for loss_type in ("iou", "giou"):
            for reduction in ("none", "mean", "sum"):
                fn = jax.jit(
                    lambda p, t, r=reduction, lt=loss_type: iou_loss(
                        p, t, reduction=r, loss_type=lt))
                out = jax.block_until_ready(fn(pred, target))
                ref = _iou_loss_ref(pred, target, reduction=reduction,
                                    loss_type=loss_type)
                if not jnp.allclose(out, ref, atol=1e-5, rtol=1e-5):
                    ok = False

    if ok:
        print("KERNEL_OK")
    else:
        print("MISMATCH")
</pallas_src>

<mosaic_0001>
module attributes {stable_mosaic.version = 11 : i64} {
  func.func @_iou_loss_kernel(%arg0: i32, %arg1: memref<8x8x128xf32, #tpu.memory_space<vmem>>, %arg2: memref<8x128xf32, #tpu.memory_space<vmem>>) attributes {dimension_semantics = [#tpu.dimension_semantics<parallel>], iteration_bounds = array<i64: 1>, scalar_prefetch = 0 : i64, scratch_operands = 0 : i64, tpu.core_type = #tpu.core_type<tc>, window_params = [{transform_indices = @transform_0, window_bounds = array<i64: 8, 8, 128>}, {transform_indices = @transform_1, window_bounds = array<i64: 8, 128>}]} {
    %c0 = arith.constant 0 : index
    %c0_0 = arith.constant 0 : index
    %c0_1 = arith.constant 0 : index
    %0 = vector.load %arg1[%c0, %c0_0, %c0_1] : memref<8x8x128xf32, #tpu.memory_space<vmem>>, vector<1x8x128xf32>
    %1 = vector.shape_cast %0 : vector<1x8x128xf32> to vector<8x128xf32>
    %c1 = arith.constant 1 : index
    %c0_2 = arith.constant 0 : index
    %c0_3 = arith.constant 0 : index
    %2 = vector.load %arg1[%c1, %c0_2, %c0_3] : memref<8x8x128xf32, #tpu.memory_space<vmem>>, vector<1x8x128xf32>
    %3 = vector.shape_cast %2 : vector<1x8x128xf32> to vector<8x128xf32>
    %c2 = arith.constant 2 : index
    %c0_4 = arith.constant 0 : index
    %c0_5 = arith.constant 0 : index
    %4 = vector.load %arg1[%c2, %c0_4, %c0_5] : memref<8x8x128xf32, #tpu.memory_space<vmem>>, vector<1x8x128xf32>
    %5 = vector.shape_cast %4 : vector<1x8x128xf32> to vector<8x128xf32>
    %c3 = arith.constant 3 : index
    %c0_6 = arith.constant 0 : index
    %c0_7 = arith.constant 0 : index
    %6 = vector.load %arg1[%c3, %c0_6, %c0_7] : memref<8x8x128xf32, #tpu.memory_space<vmem>>, vector<1x8x128xf32>
    %7 = vector.shape_cast %6 : vector<1x8x128xf32> to vector<8x128xf32>
    %c4 = arith.constant 4 : index
    %c0_8 = arith.constant 0 : index
    %c0_9 = arith.constant 0 : index
    %8 = vector.load %arg1[%c4, %c0_8, %c0_9] : memref<8x8x128xf32, #tpu.memory_space<vmem>>, vector<1x8x128xf32>
    %9 = vector.shape_cast %8 : vector<1x8x128xf32> to vector<8x128xf32>
    %c5 = arith.constant 5 : index
    %c0_10 = arith.constant 0 : index
    %c0_11 = arith.constant 0 : index
    %10 = vector.load %arg1[%c5, %c0_10, %c0_11] : memref<8x8x128xf32, #tpu.memory_space<vmem>>, vector<1x8x128xf32>
    %11 = vector.shape_cast %10 : vector<1x8x128xf32> to vector<8x128xf32>
    %c6 = arith.constant 6 : index
    %c0_12 = arith.constant 0 : index
    %c0_13 = arith.constant 0 : index
    %12 = vector.load %arg1[%c6, %c0_12, %c0_13] : memref<8x8x128xf32, #tpu.memory_space<vmem>>, vector<1x8x128xf32>
    %13 = vector.shape_cast %12 : vector<1x8x128xf32> to vector<8x128xf32>
    %c7 = arith.constant 7 : index
    %c0_14 = arith.constant 0 : index
    %c0_15 = arith.constant 0 : index
    %14 = vector.load %arg1[%c7, %c0_14, %c0_15] : memref<8x8x128xf32, #tpu.memory_space<vmem>>, vector<1x8x128xf32>
    %15 = vector.shape_cast %14 : vector<1x8x128xf32> to vector<8x128xf32>
    %cst = arith.constant 5.000000e-01 : f32
    %16 = vector.broadcast %cst : f32 to vector<8x128xf32>
    %17 = arith.mulf %5, %16 : vector<8x128xf32>
    %cst_16 = arith.constant 5.000000e-01 : f32
    %18 = vector.broadcast %cst_16 : f32 to vector<8x128xf32>
    %19 = arith.mulf %7, %18 : vector<8x128xf32>
    %cst_17 = arith.constant 5.000000e-01 : f32
    %20 = vector.broadcast %cst_17 : f32 to vector<8x128xf32>
    %21 = arith.mulf %13, %20 : vector<8x128xf32>
    %cst_18 = arith.constant 5.000000e-01 : f32
    %22 = vector.broadcast %cst_18 : f32 to vector<8x128xf32>
    %23 = arith.mulf %15, %22 : vector<8x128xf32>
    %24 = arith.subf %1, %17 : vector<8x128xf32>
    %25 = arith.addf %1, %17 : vector<8x128xf32>
    %26 = arith.subf %3, %19 : vector<8x128xf32>
    %27 = arith.addf %3, %19 : vector<8x128xf32>
    %28 = arith.subf %9, %21 : vector<8x128xf32>
    %29 = arith.addf %9, %21 : vector<8x128xf32>
    %30 = arith.subf %11, %23 : vector<8x128xf32>
    %31 = arith.addf %11, %23 : vector<8x128xf32>
    %32 = arith.maximumf %24, %28 : vector<8x128xf32>
    %33 = arith.maximumf %26, %30 : vector<8x128xf32>
    %34 = arith.minimumf %25, %29 : vector<8x128xf32>
    %35 = arith.minimumf %27, %31 : vector<8x128xf32>
    %36 = arith.mulf %5, %7 : vector<8x128xf32>
    %37 = arith.mulf %13, %15 : vector<8x128xf32>
    %38 = arith.cmpf olt, %32, %34 : vector<8x128xf32>
    %39 = arith.cmpf olt, %33, %35 : vector<8x128xf32>
    %40 = arith.andi %38, %39 : vector<8x128xi1>
    %cst_19 = arith.constant 1.000000e+00 : f32
    %cst_20 = arith.constant 0.000000e+00 : f32
    %41 = vector.broadcast %cst_19 : f32 to vector<8x128xf32>
    %42 = vector.broadcast %cst_20 : f32 to vector<8x128xf32>
    %43 = arith.select %40, %41, %42 : vector<8x128xi1>, vector<8x128xf32>
    %44 = arith.subf %34, %32 : vector<8x128xf32>
    %45 = arith.subf %35, %33 : vector<8x128xf32>
    %46 = arith.mulf %44, %45 : vector<8x128xf32>
    %47 = arith.mulf %46, %43 : vector<8x128xf32>
    %48 = arith.addf %36, %37 : vector<8x128xf32>
    %49 = arith.subf %48, %47 : vector<8x128xf32>
    %cst_21 = arith.constant 1.000000e-16 : f32
    %50 = vector.broadcast %cst_21 : f32 to vector<8x128xf32>
    %51 = arith.addf %49, %50 : vector<8x128xf32>
    %52 = tpu.reciprocal %51 : vector<8x128xf32> -> vector<8x128xf32>
    %53 = arith.mulf %47, %52 : vector<8x128xf32>
    %54 = arith.mulf %53, %53 : vector<8x128xf32>
    %cst_22 = arith.constant 1.000000e+00 : f32
    %55 = vector.broadcast %cst_22 : f32 to vector<8x128xf32>
    %56 = arith.subf %55, %54 : vector<8x128xf32>
    %c0_23 = arith.constant 0 : index
    %c0_24 = arith.constant 0 : index
    %57 = vector.load %arg2[%c0_23, %c0_24] : memref<8x128xf32, #tpu.memory_space<vmem>>, vector<8x128xf32>
    tpu.vector_store %arg2[%c0_23, %c0_24], %56 {strides = array<i32>} : memref<8x128xf32, #tpu.memory_space<vmem>>, vector<8x128xf32>,
    return
  }
  func.func @transform_0(%arg0: i32) -> (i32, i32, i32) {
    %c0_i32 = arith.constant 0 : i32
    %c0_i32_0 = arith.constant 0 : i32
    %c0_i32_1 = arith.constant 0 : i32
    return %c0_i32, %arg0, %c0_i32_0 : i32, i32, i32
  }
  func.func @transform_1(%arg0: i32) -> (i32, i32) {
    %c0_i32 = arith.constant 0 : i32
    %c0_i32_0 = arith.constant 0 : i32
    return %arg0, %c0_i32 : i32, i32
  }
}

</mosaic_0001>

<llo_original>
// kernel: _lambda_.1
$region0: #{_lambda_.1}
  #allocation0 [shape = 'u32[]', space=smem, size = 0x4, offset = 0x4, fixed_abs, tag = 'smem constant byte address 0x4 - core index']
  #allocation1 [shape = 'u32[144,128]{1,0:T(1,128)}', space=vmem, size = 0x12000, scoped, tag = 'internal scratch']
  %s0 = inlined_call_operand.vmem [shape: f32[8,8,128], index: 0, kind: input, shape index: {}]
  %s1 = inlined_call_operand.vmem [shape: f32[8,128], index: 1, kind: output, shape index: {}]
  %s2 = sld [smem:[#allocation0]]
  $region14: #{_lambda_.1} parent=0
    _
  %s4 = ssub.s32 1, %s2
  %s5 = scalar_select 0, %s4, %s2
  // Predicated region
  $region2: #{_lambda_.1} parent=0 // pred_check
    _
  $region3: #{_lambda_.1} parent=0 // pred_check_branch
    %7 = sbr.rel (0) target = $region5
  $region4: #{_lambda_.1} parent=0 // pred_region
    _
  $region5: #{_lambda_.1} parent=0 // pred_fallthru
    _
  %v8 = vld [vmem:[%s0] sm:$0xff]
  %s9 = scalar_lea.vmem %s0, 8
  %v10 = vld [vmem:[%s9] sm:$0xff]
  %s11 = scalar_lea.vmem %s0, 16
  %v12 = vld [vmem:[%s11] sm:$0xff]
  %s13 = scalar_lea.vmem %s0, 24
  %v14 = vld [vmem:[%s13] sm:$0xff]
  %s15 = scalar_lea.vmem %s0, 32
  %v16 = vld [vmem:[%s15] sm:$0xff]
  %s17 = scalar_lea.vmem %s0, 40
  %v18 = vld [vmem:[%s17] sm:$0xff]
  %s19 = scalar_lea.vmem %s0, 48
  %v20 = vld [vmem:[%s19] sm:$0xff]
  %s21 = scalar_lea.vmem %s0, 56
  %v22 = vld [vmem:[%s21] sm:$0xff]
  %v23 = vmul.f32 %v12, 0.5
  %v24 = vmul.f32 %v14, 0.5
  %v25 = vmul.f32 %v20, 0.5
  %v26 = vmul.f32 %v22, 0.5
  %v27 = vsub.f32 %v8, %v23
  %v28 = vadd.f32 %v8, %v23
  %v29 = vsub.f32 %v10, %v24
  %v30 = vadd.f32 %v10, %v24
  %v31 = vsub.f32 %v16, %v25
  %v32 = vadd.f32 %v16, %v25
  %v33 = vsub.f32 %v18, %v26
  %v34 = vadd.f32 %v18, %v26
  %v35 = vmax.f32 %v27, %v31
  %v36 = vmax.f32 %v29, %v33
  %v37 = vmin.f32 %v28, %v32
  %v38 = vmin.f32 %v30, %v34
  %v39 = vmul.f32 %v12, %v14
  %v40 = vmul.f32 %v20, %v22
  %vm41 = vcmp.lt.f32.partialorder %v35, %v37
  %vm42 = vcmp.lt.f32.partialorder %v36, %v38
  %vm43 = vmand %vm41, %vm42
  %v44 = vsel %vm43, 1.0, 0.0
  %v45 = vsub.f32 %v37, %v35
  %v46 = vsub.f32 %v38, %v36
  %v47 = vmul.f32 %v45, %v46
  %v48 = vmul.f32 %v47, %v44
  %v49 = vadd.f32 %v39, %v40
  %v50 = vsub.f32 %v49, %v48
  %v51 = vadd.f32 %v50, 1e-16
  %v52 = vrcp.pop %v51
  %v53 = vmul.f32 %v48, %v52
  %v54 = vmul.f32 %v53, %v53
  %v55 = vsub.f32 1.0, %v54
  %56 = vst [vmem:[%s1] sm:$0xff] %v55
  // Predicated region
  $region6: #{_lambda_.1} parent=0 // pred_check
    _
  $region7: #{_lambda_.1} parent=0 // pred_check_branch
    %58 = sbr.rel (0) target = $region9
  $region8: #{_lambda_.1} parent=0 // pred_region
    _
  $region9: #{_lambda_.1} parent=0 // pred_fallthru
    _
  // Predicated region
  $region10: #{_lambda_.1} parent=0 // pred_check
    _
  $region11: #{_lambda_.1} parent=0 // pred_check_branch
    %60 = sbr.rel (0) target = $region13
  $region12: #{_lambda_.1} parent=0 // pred_region
    _
  $region13: #{_lambda_.1} parent=0 // pred_fallthru
    _

</llo_original>
